<compile_context>
chip_gen: v5e
topology: v5e:2x2
jax: 0.10.0
libtpu: 0.0.40
codegen_flags: <defaults>
</compile_context>

<pallas_src>
import math

import jax
import jax.numpy as jnp
from jax.experimental import pallas as pl
from jax.experimental.pallas import tpu as pltpu


def get_node_feature_dims():
    # Synthetic, deterministic per-feature dims (the real egnn code provides
    # these; only the shapes matter here).
    return [11, 5, 7, 9]


def _round_up(x, m):
    return ((x + m - 1) // m) * m


def _pick_fold(d, e, lane=128, max_fold=16):
    """Smallest power-of-two F such that F*d and F*e are lane (128) multiples."""
    f = 1
    while f <= max_fold:
        if (f * d) % lane == 0 and (f * e) % lane == 0:
            return f
        f *= 2
    return 1


# ---------------------------------------------------------------------------
# Pallas kernel: fused (x @ W + b) on the lane-folded layout.
# ---------------------------------------------------------------------------
def _node_encoder_kernel(x_ref, w_ref, b_ref, o_ref):
    # x_ref: (TR, fold*D) f32     w_ref: (fold*D, fold*E) f32 (block-diagonal)
    # b_ref: (1, fold*E)  f32     o_ref: (TR, fold*E) out_dtype
    acc = jnp.dot(x_ref[...], w_ref[...], preferred_element_type=jnp.float32)
    o_ref[...] = (acc + b_ref[...]).astype(o_ref.dtype)


def node_encoder_forward(x, w_cat, b_sum, *, tile_n=16384,
                         vmem_budget_bytes=32 << 20,
                         out_dtype=jnp.float32):
    """Fused node encoder: out = x @ w_cat + b_sum.

    x:     (N, D_total) float32
    w_cat: (D_total, E) float32  (concat of per-chunk W_i^T along the input axis)
    b_sum: (1, E)       float32  (sum of per-chunk biases)
    returns (N, E) out_dtype
    """
    N, D = x.shape
    E = w_cat.shape[1]
    out_bytes = jnp.dtype(out_dtype).itemsize

    # --- lane-dense row folding ------------------------------------------------
    fold = _pick_fold(D, E)
    Df, Ef = fold * D, fold * E
    rows = pl.cdiv(N, fold)                  # folded row count
    n_fold = rows * fold
    if n_fold != N:
        # Tiny (< fold rows) pad so the pure-reshape row folding is legal.
        x = jnp.concatenate([x, jnp.zeros((n_fold - N, D), x.dtype)], axis=0)
    x_f = x.reshape(rows, Df)                # contiguous rows -> pure reshape

    if fold > 1:
        # Block-diagonal weight: `fold` copies of w_cat on the diagonal, so one
        # folded-row matmul computes `fold` independent row matmuls per MXU tile.
        w_f = jnp.kron(jnp.eye(fold, dtype=w_cat.dtype), w_cat)   # (Df, Ef)
        b_f = jnp.tile(b_sum, (1, fold))                          # (1, Ef)
    else:
        w_f, b_f = w_cat, b_sum

    # --- row-tile selection ------------------------------------------------------
    tile_rows = max(8, _round_up(max(1, tile_n // fold), 8))
    # v7x: keep >= 4 grid steps (when there is enough work) so the "parallel"
    # row axis shards across both TensorCores.  No-op on v5e/v6e (1 TC).
    if rows >= 32:
        tile_rows = min(tile_rows, _round_up(pl.cdiv(rows, 4), 8))

    # VMEM cap: double-buffered x + out tiles plus the resident weight/bias.
    def _vmem_use(tr):
        return 2 * tr * (Df * 4 + Ef * out_bytes) + Df * Ef * 4 + Ef * 4

    while tile_rows > 8 and _vmem_use(tile_rows) > (vmem_budget_bytes * 3) // 4:
        tile_rows = max(8, _round_up(tile_rows // 2, 8))
    if tile_rows >= rows:
        tile_rows = rows                     # single block covering the full array

    grid = (pl.cdiv(rows, tile_rows),)       # ragged last block handled by Pallas

    cost = pl.CostEstimate(
        flops=2 * rows * Df * Ef,
        transcendentals=0,
        bytes_accessed=(rows * Df * 4 + Df * Ef * 4 + Ef * 4
                        + rows * Ef * out_bytes),
    )

    out = pl.pallas_call(
        _node_encoder_kernel,
        out_shape=jax.ShapeDtypeStruct((rows, Ef), out_dtype),
        grid_spec=pltpu.PrefetchScalarGridSpec(
            num_scalar_prefetch=0,
            grid=grid,
            in_specs=[
                pl.BlockSpec((tile_rows, Df), lambda i: (i, 0)),  # streamed x tile
                pl.BlockSpec((Df, Ef), lambda i: (0, 0)),         # resident weight
                pl.BlockSpec((1, Ef), lambda i: (0, 0)),          # resident bias
            ],
            out_specs=pl.BlockSpec((tile_rows, Ef), lambda i: (i, 0)),
        ),
        compiler_params=pltpu.CompilerParams(
            dimension_semantics=("parallel",),    # row axis shards over v7x's 2 TCs
            vmem_limit_bytes=vmem_budget_bytes,   # v5e scoped default is only 16 MiB
        ),
        cost_estimate=cost,
    )(x_f, w_f, b_f)

    out = out.reshape(n_fold, E)
    if n_fold != N:
        out = out[:N]
    return out


# ---------------------------------------------------------------------------
# Parameter construction (deterministic, mirrors nn.Linear init shapes).
# ---------------------------------------------------------------------------
def init_node_encoder_params(key, emb_dim):
    dims = get_node_feature_dims()
    weights, biases = [], []
    for dim in dims:
        key, kw, kb = jax.random.split(key, 3)
        bound_w = math.sqrt(6.0 / (dim + emb_dim))           # xavier_uniform_
        w = jax.random.uniform(kw, (emb_dim, dim), jnp.float32,
                               minval=-bound_w, maxval=bound_w)
        bound_b = 1.0 / math.sqrt(dim)                       # default Linear bias init
        b = jax.random.uniform(kb, (emb_dim,), jnp.float32,
                               minval=-bound_b, maxval=bound_b)
        weights.append(w)
        biases.append(b)
    w_cat = jnp.concatenate([w.T for w in weights], axis=0)      # (sum(dims), E)
    b_sum = jnp.sum(jnp.stack(biases, axis=0), axis=0)[None, :]  # (1, E)
    return weights, biases, w_cat, b_sum


def reference_forward(x, weights, biases):
    """Pure-JAX f32 reference identical to the PyTorch loop."""
    dims = get_node_feature_dims()
    out = 0.0
    off = 0
    for w, b, d in zip(weights, biases, dims):
        out = out + x[:, off:off + d] @ w.T + b
        off += d
    return out


if __name__ == "__main__":
    emb_dim = 32
    dims = get_node_feature_dims()
    d_total = sum(dims)          # 32

    key = jax.random.PRNGKey(0)
    key, kparam = jax.random.split(key)
    weights, biases, w_cat, b_sum = init_node_encoder_params(kparam, emb_dim)

    # --- case 1: tiny node count (single block, rows < 8) ----------------------
    n_small = 8
    key, kx1 = jax.random.split(key)
    x1 = jax.random.normal(kx1, (n_small, d_total), jnp.float32)
    out1 = jax.block_until_ready(node_encoder_forward(x1, w_cat, b_sum))
    ref1 = reference_forward(x1, weights, biases)
    assert out1.shape == (n_small, emb_dim)
    assert jnp.allclose(out1, ref1, atol=1e-2, rtol=1e-2), "mismatch (small N)"

    # --- case 2: N not divisible by fold or tile -> tiny pad + ragged grid -----
    n_odd = 300
    key, kx2 = jax.random.split(key)
    x2 = jax.random.normal(kx2, (n_odd, d_total), jnp.float32)
    out2 = jax.block_until_ready(
        node_encoder_forward(x2, w_cat, b_sum, tile_n=128))
    ref2 = reference_forward(x2, weights, biases)
    assert out2.shape == (n_odd, emb_dim)
    assert jnp.allclose(out2, ref2, atol=1e-2, rtol=1e-2), "mismatch (odd N)"

    # --- case 3: multi-step grid + optional bf16 output -------------------------
    n_big = 1000
    key, kx3 = jax.random.split(key)
    x3 = jax.random.normal(kx3, (n_big, d_total), jnp.float32)
    out3 = jax.block_until_ready(
        node_encoder_forward(x3, w_cat, b_sum, tile_n=256))
    ref3 = reference_forward(x3, weights, biases)
    assert out3.shape == (n_big, emb_dim)
    assert jnp.allclose(out3, ref3, atol=1e-2, rtol=1e-2), "mismatch (multi-tile)"

    out3_bf = jax.block_until_ready(
        node_encoder_forward(x3, w_cat, b_sum, tile_n=256,
                             out_dtype=jnp.bfloat16))
    assert out3_bf.dtype == jnp.bfloat16
    assert jnp.allclose(out3_bf.astype(jnp.float32), ref3,
                        atol=5e-2, rtol=5e-2), "mismatch (bf16 out)"

    print("KERNEL_OK")
</pallas_src>

<mosaic_0001>
module attributes {stable_mosaic.version = 11 : i64} {
  func.func @_node_encoder_kernel(%arg0: i32, %arg1: memref<2x128xf32, #tpu.memory_space<vmem>>, %arg2: memref<128x128xf32, #tpu.memory_space<vmem>>, %arg3: memref<1x128xf32, #tpu.memory_space<vmem>>, %arg4: memref<2x128xf32, #tpu.memory_space<vmem>>) attributes {dimension_semantics = [#tpu.dimension_semantics<parallel>], iteration_bounds = array<i64: 1>, scalar_prefetch = 0 : i64, scratch_operands = 0 : i64, tpu.core_type = #tpu.core_type<tc>, window_params = [{transform_indices = @transform_0, window_bounds = array<i64: 2, 128>}, {pipeline_mode = #tpu.pipeline_mode<synchronous>, transform_indices = @transform_1, window_bounds = array<i64: 128, 128>}, {pipeline_mode = #tpu.pipeline_mode<synchronous>, transform_indices = @transform_2, window_bounds = array<i64: 1, 128>}, {transform_indices = @transform_3, window_bounds = array<i64: 2, 128>}]} {
    %c0 = arith.constant 0 : index
    %c0_0 = arith.constant 0 : index
    %0 = vector.load %arg1[%c0, %c0_0] : memref<2x128xf32, #tpu.memory_space<vmem>>, vector<2x128xf32>
    %c0_1 = arith.constant 0 : index
    %c0_2 = arith.constant 0 : index
    %1 = vector.load %arg2[%c0_1, %c0_2] : memref<128x128xf32, #tpu.memory_space<vmem>>, vector<128x128xf32>
    %cst = arith.constant dense<0.000000e+00> : vector<2x128xf32>
    %2 = tpu.matmul %0, %1, %cst {dimension_numbers = #tpu.dot_dimension_numbers<[1], [0], [0], [1], [0, 0, 1, 1], [], []>} : vector<2x128xf32>, vector<128x128xf32>, vector<2x128xf32> -> vector<2x128xf32>
    %c0_3 = arith.constant 0 : index
    %c0_4 = arith.constant 0 : index
    %3 = vector.load %arg3[%c0_3, %c0_4] : memref<1x128xf32, #tpu.memory_space<vmem>>, vector<1x128xf32>
    %4 = vector.broadcast %3 : vector<1x128xf32> to vector<2x128xf32>
    %5 = arith.addf %2, %4 : vector<2x128xf32>
    %c0_5 = arith.constant 0 : index
    %c0_6 = arith.constant 0 : index
    %6 = vector.load %arg4[%c0_5, %c0_6] : memref<2x128xf32, #tpu.memory_space<vmem>>, vector<2x128xf32>
    tpu.vector_store %arg4[%c0_5, %c0_6], %5 {strides = array<i32>} : memref<2x128xf32, #tpu.memory_space<vmem>>, vector<2x128xf32>,
    return
  }
  func.func @transform_0(%arg0: i32) -> (i32, i32) {
    %c0_i32 = arith.constant 0 : i32
    %c0_i32_0 = arith.constant 0 : i32
    return %arg0, %c0_i32 : i32, i32
  }
  func.func @transform_1(%arg0: i32) -> (i32, i32) {
    %c0_i32 = arith.constant 0 : i32
    %c0_i32_0 = arith.constant 0 : i32
    %c0_i32_1 = arith.constant 0 : i32
    return %c0_i32, %c0_i32_0 : i32, i32
  }
  func.func @transform_2(%arg0: i32) -> (i32, i32) {
    %c0_i32 = arith.constant 0 : i32
    %c0_i32_0 = arith.constant 0 : i32
    %c0_i32_1 = arith.constant 0 : i32
    return %c0_i32, %c0_i32_0 : i32, i32
  }
  func.func @transform_3(%arg0: i32) -> (i32, i32) {
    %c0_i32 = arith.constant 0 : i32
    %c0_i32_0 = arith.constant 0 : i32
    return %arg0, %c0_i32 : i32, i32
  }
}

</mosaic_0001>

<llo_original>
// kernel: tpu_custom_call.1
$region0: #{tpu_custom_call.1}
  #allocation0 [shape = 'u32[]', space=smem, size = 0x4, offset = 0x4, fixed_abs, tag = 'smem constant byte address 0x4 - core index']
  #allocation1 [shape = 'u32[72,128]{1,0:T(1,128)}', space=vmem, size = 0x9000, scoped, tag = 'internal scratch']
  %s0 = inlined_call_operand.hbm [shape: f32[2,128], index: 0, kind: input, shape index: {}]
  %s1 = inlined_call_operand.hbm [shape: f32[128,128], index: 1, kind: input, shape index: {}]
  %s2 = inlined_call_operand.vmem [shape: f32[1,128], index: 2, kind: input, shape index: {}]
  %s3 = inlined_call_operand.hbm [shape: f32[2,128], index: 3, kind: output, shape index: {}]
  %s4 = sld [smem:[#allocation0]]
  $region30: #{tpu_custom_call.1} parent=0
    _
  %s6 = ssub.s32 1, %s4
  %s7 = scalar_select 0, %s6, %s4
  $region1: #{tpu_custom_call.1} parent=0
    #allocation2 [shape = 'u8[1024]{0}', space=vmem, size = 0x400, scoped, tag = 'input window, operand 0, single buffered']
    #allocation3 [shape = 's32[1]{0}', space=sflag, size = 0x4, scoped, tag = 'scoped memory for tpu_custom_call.1']
    #allocation4 [shape = 's32[1]{0}', space=sflag, size = 0x4, scoped, tag = 'scoped memory for tpu_custom_call.1']
    #allocation5 [shape = 'u8[65536]{0}', space=vmem, size = 0x10000, scoped, tag = 'input window, operand 1, single buffered']
    #allocation6 [shape = 's32[1]{0}', space=sflag, size = 0x4, scoped, tag = 'scoped memory for tpu_custom_call.1']
    #allocation7 [shape = 'u8[1024]{0}', space=vmem, size = 0x400, scoped, tag = 'output window, operand 0, single buffered']
    %8 = vsyncpa [#allocation3], 0
    %9 = vsyncpa [#allocation6], 0
    %10 = vsyncpa [#allocation4], 0
    // Predicated region
    $region2: #{tpu_custom_call.1} parent=1 // pred_check
      _
    $region3: #{tpu_custom_call.1} parent=1 // pred_check_branch
      %12 = sbr.rel (0) target = $region5
    $region4: #{tpu_custom_call.1} parent=1 // pred_region
      %14 = vsyncadd [#allocation3], 0
      %s16 = sshll.u32 %s0, 4
      %s17 = int_to_ptr.hbm [resolvable:$true] %s16
      %s18 = sshll.u32 [#allocation2], 4
      %s19 = int_to_ptr.vmem [resolvable:$true] %s18
      %21 = dma.hbm_to_vmem [thread:$0]  %s17, 32, %s19, [#allocation3]
    $region5: #{tpu_custom_call.1} parent=1 // pred_fallthru
      _
    // Predicated region
    $region6: #{tpu_custom_call.1} parent=1 // pred_check
      _
    $region7: #{tpu_custom_call.1} parent=1 // pred_check_branch
      %23 = sbr.rel (0) target = $region9
    $region8: #{tpu_custom_call.1} parent=1 // pred_region
      %25 = vsyncadd [#allocation6], 0
      %s26 = sshll.u32 %s1, 4
      %s27 = int_to_ptr.hbm [resolvable:$true] %s26
      %s28 = sshll.u32 [#allocation5], 4
      %s29 = int_to_ptr.vmem [resolvable:$true] %s28
      %34 = dma.hbm_to_vmem [thread:$0]  %s27, 2048, %s29, [#allocation6], 128, 128, 8
    $region9: #{tpu_custom_call.1} parent=1 // pred_fallthru
      _
    // Predicated region
    $region10: #{tpu_custom_call.1} parent=1 // pred_check
      _
    $region11: #{tpu_custom_call.1} parent=1 // pred_check_branch
      %36 = sbr.rel (0) target = $region13
    $region12: #{tpu_custom_call.1} parent=1 // pred_region
      _
    $region13: #{tpu_custom_call.1} parent=1 // pred_fallthru
      _
    // Predicated region
    $region14: #{tpu_custom_call.1} parent=1 // pred_check
      _
    $region15: #{tpu_custom_call.1} parent=1 // pred_check_branch
      %38 = sbr.rel (0) target = $region17
    $region16: #{tpu_custom_call.1} parent=1 // pred_region
      %40 = dma.done [#allocation3], 32
    $region17: #{tpu_custom_call.1} parent=1 // pred_fallthru
      _
    // Predicated region
    $region18: #{tpu_custom_call.1} parent=1 // pred_check
      _
    $region19: #{tpu_custom_call.1} parent=1 // pred_check_branch
      %42 = sbr.rel (0) target = $region21
    $region20: #{tpu_custom_call.1} parent=1 // pred_region
      %44 = dma.done [#allocation6], 2048
    $region21: #{tpu_custom_call.1} parent=1 // pred_fallthru
      _
    %v45 = vld [vmem:[#allocation2] sm:$0x3]
    %v46 = vld [vmem:[#allocation5] sm:$0xff]
    %v47 = vld [vmem:[#allocation5 + $0x8] sm:$0xff]
    %v48 = vld [vmem:[#allocation5 + $0x10] sm:$0xff]
    %v49 = vld [vmem:[#allocation5 + $0x18] sm:$0xff]
    %v50 = vld [vmem:[#allocation5 + $0x20] sm:$0xff]
    %v51 = vld [vmem:[#allocation5 + $0x28] sm:$0xff]
    %v52 = vld [vmem:[#allocation5 + $0x30] sm:$0xff]
    %v53 = vld [vmem:[#allocation5 + $0x38] sm:$0xff]
    %v54 = vld [vmem:[#allocation5 + $0x40] sm:$0xff]
    %v55 = vld [vmem:[#allocation5 + $0x48] sm:$0xff]
    %v56 = vld [vmem:[#allocation5 + $0x50] sm:$0xff]
    %v57 = vld [vmem:[#allocation5 + $0x58] sm:$0xff]
    %v58 = vld [vmem:[#allocation5 + $0x60] sm:$0xff]
    %v59 = vld [vmem:[#allocation5 + $0x68] sm:$0xff]
    %v60 = vld [vmem:[#allocation5 + $0x70] sm:$0xff]
    %v61 = vld [vmem:[#allocation5 + $0x78] sm:$0xff]
    %v62 = vld [vmem:[%s2] sm:$0x1]
    %v64 = vperm.slane %v62, 0
    %66 = vmatpush.msra.mxu0 %v61
    %67 = vmatpush.msra.mxu0 %v60
    %68 = vmatpush.msra.mxu0 %v59
    %69 = vmatpush.msra.mxu0 %v58
    %70 = vmatpush.msra.mxu0 %v57
    %71 = vmatpush.msra.mxu0 %v56
    %72 = vmatpush.msra.mxu0 %v55
    %73 = vmatpush.msra.mxu0 %v54
    %74 = vmatpush.msra.mxu0 %v53
    %75 = vmatpush.msra.mxu0 %v52
    %76 = vmatpush.msra.mxu0 %v51
    %77 = vmatpush.msra.mxu0 %v50
    %78 = vmatpush.msra.mxu0 %v49
    %79 = vmatpush.msra.mxu0 %v48
    %80 = vmatpush.msra.mxu0 %v47
    %81 = vmatpush.msra.mxu0 %v46
    %82 = vmatmul.f32.gmra.mxu0 %v45
    %v83 = vpop.f32.mrf.mxu0
    %v84 = vadd.f32 %v64, %v83
    %85 = vdwg.mxu0
    %86 = vst [vmem:[#allocation7] sm:$0x3] %v84
    // Predicated region
    $region22: #{tpu_custom_call.1} parent=1 // pred_check
      _
    $region23: #{tpu_custom_call.1} parent=1 // pred_check_branch
      %88 = sbr.rel (0) target = $region25
    $region24: #{tpu_custom_call.1} parent=1 // pred_region
      %90 = vsyncadd [#allocation4], 0
      %s92 = sshll.u32 [#allocation7], 4
      %s93 = int_to_ptr.vmem [resolvable:$true] %s92
      %s94 = sshll.u32 %s3, 4
      %s95 = int_to_ptr.hbm [resolvable:$true] %s94
      %97 = dma.vmem_to_hbm [thread:$0]  %s93, 32, %s95, [#allocation4]
    $region25: #{tpu_custom_call.1} parent=1 // pred_fallthru
      _
    // Predicated region
    $region26: #{tpu_custom_call.1} parent=1 // pred_check
      _
    $region27: #{tpu_custom_call.1} parent=1 // pred_check_branch
      %99 = sbr.rel (0) target = $region29
    $region28: #{tpu_custom_call.1} parent=1 // pred_region
      %101 = dma.done [#allocation4], 32
    $region29: #{tpu_custom_call.1} parent=1 // pred_fallthru
      _
    %102 = vsyncpa [#allocation3], 1
    %103 = vsyncpa [#allocation6], 1
    %104 = vsyncpa [#allocation4], 1

</llo_original>
